<compile_context>
chip_gen: v7x
topology: tpu7x:2x2x1
jax: 0.10.0
libtpu: 0.0.40
codegen_flags: <defaults>
</compile_context>

<pallas_src>
import math

import jax
import jax.numpy as jnp
from jax import lax
from jax.experimental import pallas as pl
from jax.experimental.pallas import tpu as pltpu

_INV_SQRT2 = 1.0 / math.sqrt(2.0)


def _mlp_kernel(x_ref, w1_ref, b1_ref, w2_ref, b2_ref, o_ref):
    # x_ref: (tm, Cin)  w1_ref: (Cin, Hid)  b1_ref: (1, Hid)
    # w2_ref: (Hid, Cout)  b2_ref: (1, Cout)  o_ref: (tm, Cout)
    x = x_ref[...]

    # fc1 -> f32 accumulation on the MXU
    h = jnp.dot(x, w1_ref[...], preferred_element_type=jnp.float32)
    h = h + b1_ref[...].astype(jnp.float32)

    # exact GELU (matches nn.GELU(approximate='none')); EUP/VPU path, f32 stats
    h = 0.5 * h * (1.0 + lax.erf(h * _INV_SQRT2))

    # fc2 -> f32 accumulation on the MXU
    o = jnp.dot(h.astype(w2_ref.dtype), w2_ref[...],
                preferred_element_type=jnp.float32)
    o = o + b2_ref[...].astype(jnp.float32)

    o_ref[...] = o.astype(o_ref.dtype)


def _vmem_estimate_bytes(tm, cin, hid, cout, itemsize=4):
    # double-buffered activation tiles + (default double-buffered) resident
    # weights/biases + hidden-activation working set
    act = 2 * tm * cin + 2 * tm * cout
    wts = 2 * (cin * hid + hid + hid * cout + cout)
    inter = 2 * tm * hid
    return (act + wts + inter) * itemsize


def mlp_forward(x, w1, b1, w2, b2, *, tm=512):
    """x: (B, N, Cin); w1: (Cin, Hid); b1: (Hid,); w2: (Hid, Cout); b2: (Cout,)."""
    B, N, Cin = x.shape
    Hid = w1.shape[1]
    Cout = w2.shape[1]
    assert w1.shape[0] == Cin and w2.shape[0] == Hid
    M = B * N

    xf = x.reshape(M, Cin)

    # --- choose row tile -----------------------------------------------------
    # multiple of 8 (sublane), no bigger than the (rounded-up) row count,
    # and shrunk until the working set fits a v7x-safe VMEM budget.
    m_up = ((M + 7) // 8) * 8
    tm = max(8, min(((tm // 8) * 8), m_up))
    vmem_budget = 48 << 20
    while tm > 8 and _vmem_estimate_bytes(tm, Cin, Hid, Cout) > vmem_budget:
        tm //= 2
        tm = max(8, (tm // 8) * 8)

    M_pad = pl.cdiv(M, tm) * tm
    if M_pad != M:
        xf = jnp.pad(xf, ((0, M_pad - M), (0, 0)))

    b1_2 = b1.reshape(1, Hid)
    b2_2 = b2.reshape(1, Cout)

    est = _vmem_estimate_bytes(tm, Cin, Hid, Cout)
    vmem_limit = int(min(max(est + (8 << 20), 16 << 20), 64 << 20))

    out = pl.pallas_call(
        _mlp_kernel,
        out_shape=jax.ShapeDtypeStruct((M_pad, Cout), x.dtype),
        grid_spec=pltpu.PrefetchScalarGridSpec(
            num_scalar_prefetch=0,
            grid=(M_pad // tm,),
            in_specs=[
                pl.BlockSpec((tm, Cin), lambda i: (i, 0)),
                pl.BlockSpec((Cin, Hid), lambda i: (0, 0)),   # resident
                pl.BlockSpec((1, Hid), lambda i: (0, 0)),     # resident
                pl.BlockSpec((Hid, Cout), lambda i: (0, 0)),  # resident
                pl.BlockSpec((1, Cout), lambda i: (0, 0)),    # resident
            ],
            out_specs=pl.BlockSpec((tm, Cout), lambda i: (i, 0)),
        ),
        compiler_params=pltpu.CompilerParams(
            dimension_semantics=("parallel",),
            vmem_limit_bytes=vmem_limit,
        ),
    )(xf, w1, b1_2, w2, b2_2)

    out = out[:M]
    return out.reshape(B, N, Cout)


def _reference(x, w1, b1, w2, b2):
    h = x @ w1 + b1
    h = 0.5 * h * (1.0 + lax.erf(h * _INV_SQRT2))
    return h @ w2 + b2


if __name__ == "__main__":
    key = jax.random.PRNGKey(0)
    # Small shapes consistent with the module: tokens (B=2, N=16) of width 32,
    # hidden = 4 * in_features = 128 (typical ViT mlp_ratio), out = in.
    B, N, Cin, Hid, Cout = 2, 16, 32, 128, 32
    k1, k2, k3, k4, k5 = jax.random.split(key, 5)

    x = jax.random.normal(k1, (B, N, Cin), dtype=jnp.float32)
    w1 = jax.random.normal(k2, (Cin, Hid), dtype=jnp.float32) * 0.05
    b1 = jax.random.normal(k3, (Hid,), dtype=jnp.float32) * 0.05
    w2 = jax.random.normal(k4, (Hid, Cout), dtype=jnp.float32) * 0.05
    b2 = jax.random.normal(k5, (Cout,), dtype=jnp.float32) * 0.05

    out = mlp_forward(x, w1, b1, w2, b2)
    out = jax.block_until_ready(out)

    ref = _reference(x, w1, b1, w2, b2)
    assert out.shape == (B, N, Cout), out.shape
    assert jnp.allclose(out, ref, atol=1e-4, rtol=1e-4), float(
        jnp.max(jnp.abs(out - ref)))

    print("KERNEL_OK")
</pallas_src>

<mosaic_0001>
module attributes {stable_mosaic.version = 11 : i64} {
  func.func @_mlp_kernel(%arg0: i32, %arg1: memref<32x32xf32, #tpu.memory_space<vmem>>, %arg2: memref<32x128xf32, #tpu.memory_space<vmem>>, %arg3: memref<1x128xf32, #tpu.memory_space<vmem>>, %arg4: memref<128x32xf32, #tpu.memory_space<vmem>>, %arg5: memref<1x32xf32, #tpu.memory_space<vmem>>, %arg6: memref<32x32xf32, #tpu.memory_space<vmem>>) attributes {dimension_semantics = [#tpu.dimension_semantics<parallel>], iteration_bounds = array<i64: 1>, scalar_prefetch = 0 : i64, scratch_operands = 0 : i64, tpu.core_type = #tpu.core_type<tc>, window_params = [{transform_indices = @transform_0, window_bounds = array<i64: 32, 32>}, {pipeline_mode = #tpu.pipeline_mode<synchronous>, transform_indices = @transform_1, window_bounds = array<i64: 32, 128>}, {pipeline_mode = #tpu.pipeline_mode<synchronous>, transform_indices = @transform_2, window_bounds = array<i64: 1, 128>}, {pipeline_mode = #tpu.pipeline_mode<synchronous>, transform_indices = @transform_3, window_bounds = array<i64: 128, 32>}, {pipeline_mode = #tpu.pipeline_mode<synchronous>, transform_indices = @transform_4, window_bounds = array<i64: 1, 32>}, {transform_indices = @transform_5, window_bounds = array<i64: 32, 32>}]} {
    %c0 = arith.constant 0 : index
    %c0_0 = arith.constant 0 : index
    %0 = vector.load %arg1[%c0, %c0_0] : memref<32x32xf32, #tpu.memory_space<vmem>>, vector<32x32xf32>
    %c0_1 = arith.constant 0 : index
    %c0_2 = arith.constant 0 : index
    %1 = vector.load %arg2[%c0_1, %c0_2] : memref<32x128xf32, #tpu.memory_space<vmem>>, vector<32x128xf32>
    %cst = arith.constant dense<0.000000e+00> : vector<32x128xf32>
    %2 = tpu.matmul %0, %1, %cst {dimension_numbers = #tpu.dot_dimension_numbers<[1], [0], [0], [1], [0, 0, 1, 1], [], []>} : vector<32x32xf32>, vector<32x128xf32>, vector<32x128xf32> -> vector<32x128xf32>
    %c0_3 = arith.constant 0 : index
    %c0_4 = arith.constant 0 : index
    %3 = vector.load %arg3[%c0_3, %c0_4] : memref<1x128xf32, #tpu.memory_space<vmem>>, vector<1x128xf32>
    %4 = vector.broadcast %3 : vector<1x128xf32> to vector<32x128xf32>
    %5 = arith.addf %2, %4 : vector<32x128xf32>
    %cst_5 = arith.constant 5.000000e-01 : f32
    %6 = vector.broadcast %cst_5 : f32 to vector<32x128xf32>
    %7 = arith.mulf %6, %5 : vector<32x128xf32>
    %cst_6 = arith.constant 0.707106769 : f32
    %8 = vector.broadcast %cst_6 : f32 to vector<32x128xf32>
    %9 = arith.mulf %5, %8 : vector<32x128xf32>
    %10 = math.erf %9 : vector<32x128xf32>
    %cst_7 = arith.constant 1.000000e+00 : f32
    %11 = vector.broadcast %cst_7 : f32 to vector<32x128xf32>
    %12 = arith.addf %11, %10 : vector<32x128xf32>
    %13 = arith.mulf %7, %12 : vector<32x128xf32>
    %c0_8 = arith.constant 0 : index
    %c0_9 = arith.constant 0 : index
    %14 = vector.load %arg4[%c0_8, %c0_9] : memref<128x32xf32, #tpu.memory_space<vmem>>, vector<128x32xf32>
    %cst_10 = arith.constant dense<0.000000e+00> : vector<32x32xf32>
    %15 = tpu.matmul %13, %14, %cst_10 {dimension_numbers = #tpu.dot_dimension_numbers<[1], [0], [0], [1], [0, 0, 1, 1], [], []>} : vector<32x128xf32>, vector<128x32xf32>, vector<32x32xf32> -> vector<32x32xf32>
    %c0_11 = arith.constant 0 : index
    %c0_12 = arith.constant 0 : index
    %16 = vector.load %arg5[%c0_11, %c0_12] : memref<1x32xf32, #tpu.memory_space<vmem>>, vector<1x32xf32>
    %17 = vector.broadcast %16 : vector<1x32xf32> to vector<32x32xf32>
    %18 = arith.addf %15, %17 : vector<32x32xf32>
    %c0_13 = arith.constant 0 : index
    %c0_14 = arith.constant 0 : index
    %19 = vector.load %arg6[%c0_13, %c0_14] : memref<32x32xf32, #tpu.memory_space<vmem>>, vector<32x32xf32>
    tpu.vector_store %arg6[%c0_13, %c0_14], %18 {strides = array<i32>} : memref<32x32xf32, #tpu.memory_space<vmem>>, vector<32x32xf32>,
    return
  }
  func.func @transform_0(%arg0: i32) -> (i32, i32) {
    %c0_i32 = arith.constant 0 : i32
    %c0_i32_0 = arith.constant 0 : i32
    return %arg0, %c0_i32 : i32, i32
  }
  func.func @transform_1(%arg0: i32) -> (i32, i32) {
    %c0_i32 = arith.constant 0 : i32
    %c0_i32_0 = arith.constant 0 : i32
    %c0_i32_1 = arith.constant 0 : i32
    return %c0_i32, %c0_i32_0 : i32, i32
  }
  func.func @transform_2(%arg0: i32) -> (i32, i32) {
    %c0_i32 = arith.constant 0 : i32
    %c0_i32_0 = arith.constant 0 : i32
    %c0_i32_1 = arith.constant 0 : i32
    return %c0_i32, %c0_i32_0 : i32, i32
  }
  func.func @transform_3(%arg0: i32) -> (i32, i32) {
    %c0_i32 = arith.constant 0 : i32
    %c0_i32_0 = arith.constant 0 : i32
    %c0_i32_1 = arith.constant 0 : i32
    return %c0_i32, %c0_i32_0 : i32, i32
  }
  func.func @transform_4(%arg0: i32) -> (i32, i32) {
    %c0_i32 = arith.constant 0 : i32
    %c0_i32_0 = arith.constant 0 : i32
    %c0_i32_1 = arith.constant 0 : i32
    return %c0_i32, %c0_i32_0 : i32, i32
  }
  func.func @transform_5(%arg0: i32) -> (i32, i32) {
    %c0_i32 = arith.constant 0 : i32
    %c0_i32_0 = arith.constant 0 : i32
    return %arg0, %c0_i32 : i32, i32
  }
}

</mosaic_0001>

<llo_original>
// kernel: tpu_custom_call.1
$region0: #{tpu_custom_call.1}
  #allocation0 [shape = 'u32[]', space=smem, size = 0x4, offset = 0x4, fixed_abs, tag = 'smem constant byte address 0x4 - core index']
  #allocation1 [shape = 'u32[144,128]{1,0:T(1,128)}', space=vmem, size = 0x12000, scoped, tag = 'internal scratch']
  %s0 = inlined_call_operand.vmem [shape: f32[32,32], index: 0, kind: input, shape index: {}]
  %s1 = inlined_call_operand.vmem [shape: f32[32,128], index: 1, kind: input, shape index: {}]
  %s2 = inlined_call_operand.vmem [shape: f32[1,128], index: 2, kind: input, shape index: {}]
  %s3 = inlined_call_operand.vmem [shape: f32[128,32], index: 3, kind: input, shape index: {}]
  %s4 = inlined_call_operand.vmem [shape: f32[1,32], index: 4, kind: input, shape index: {}]
  %s5 = inlined_call_operand.hbm [shape: f32[32,32], index: 5, kind: output, shape index: {}]
  %s6 = sld [smem:[#allocation0]]
  $region30: #{tpu_custom_call.1} parent=0
    _
  %s8 = ssub.s32 1, %s6
  %s9 = scalar_select 0, %s8, %s6
  $region1: #{tpu_custom_call.1} parent=0
    #allocation2 [shape = 'u8[16384]{0}', space=vmem, size = 0x4000, scoped, tag = 'output window, operand 0, single buffered']
    #allocation3 [shape = 's32[1]{0}', space=sflag, size = 0x4, scoped, tag = 'scoped memory for tpu_custom_call.1']
    %10 = vsyncpa [#allocation3], 0
    // Predicated region
    $region2: #{tpu_custom_call.1} parent=1 // pred_check
      _
    $region3: #{tpu_custom_call.1} parent=1 // pred_check_branch
      %12 = sbr.rel (0) target = $region5
    $region4: #{tpu_custom_call.1} parent=1 // pred_region
      _
    $region5: #{tpu_custom_call.1} parent=1 // pred_fallthru
      _
    // Predicated region
    $region6: #{tpu_custom_call.1} parent=1 // pred_check
      _
    $region7: #{tpu_custom_call.1} parent=1 // pred_check_branch
      %14 = sbr.rel (0) target = $region9
    $region8: #{tpu_custom_call.1} parent=1 // pred_region
      _
    $region9: #{tpu_custom_call.1} parent=1 // pred_fallthru
      _
    // Predicated region
    $region10: #{tpu_custom_call.1} parent=1 // pred_check
      _
    $region11: #{tpu_custom_call.1} parent=1 // pred_check_branch
      %16 = sbr.rel (0) target = $region13
    $region12: #{tpu_custom_call.1} parent=1 // pred_region
      _
    $region13: #{tpu_custom_call.1} parent=1 // pred_fallthru
      _
    // Predicated region
    $region14: #{tpu_custom_call.1} parent=1 // pred_check
      _
    $region15: #{tpu_custom_call.1} parent=1 // pred_check_branch
      %18 = sbr.rel (0) target = $region17
    $region16: #{tpu_custom_call.1} parent=1 // pred_region
      _
    $region17: #{tpu_custom_call.1} parent=1 // pred_fallthru
      _
    // Predicated region
    $region18: #{tpu_custom_call.1} parent=1 // pred_check
      _
    $region19: #{tpu_custom_call.1} parent=1 // pred_check_branch
      %20 = sbr.rel (0) target = $region21
    $region20: #{tpu_custom_call.1} parent=1 // pred_region
      _
    $region21: #{tpu_custom_call.1} parent=1 // pred_fallthru
      _
    %v21 = vld [vmem:[%s0] sm:$0xff]
    %v22 = vld [vmem:[%s0 + $0x8] sm:$0xff]
    %v23 = vld [vmem:[%s0 + $0x10] sm:$0xff]
    %v24 = vld [vmem:[%s0 + $0x18] sm:$0xff]
    %v25 = vld [vmem:[%s1] sm:$0xff]
    %v26 = vld [vmem:[%s1 + $0x8] sm:$0xff]
    %v27 = vld [vmem:[%s1 + $0x10] sm:$0xff]
    %v28 = vld [vmem:[%s1 + $0x18] sm:$0xff]
    %v29 = vld [vmem:[%s2] sm:$0x1]
    %v31 = vlaneseq
    %v32 = vshrl.u32 %v31, 7
    %v33 = vsub.s32 0, %v32
    %v34 = vrot.slane %v29, %v33
    %vm36 = vcmask 261120
    %v38 = vsel %vm36, %v21, 0
    %v41 = vsel %vm36, %v22, 0
    %v44 = vsel %vm36, %v23, 0
    %v47 = vsel %vm36, %v24, 0
    %49 = vmatprep.subr.mxu0 0.0
    %50 = vmatpush1.msra.mxu0 %v25
    %51 = vmatprep.subr.mxu0 0.0
    %52 = vmatpush1.msra.mxu0 %v26
    %53 = vmatprep.subr.mxu0 0.0
    %54 = vmatpush1.msra.mxu0 %v27
    %55 = vmatprep.subr.mxu0 0.0
    %56 = vmatpush1.msra.mxu0 %v28
    %57 = vmatprep.subr.mxu0 0.0
    %58 = vmatpush1.msra.mxu0 0.0
    %59 = vmatprep.subr.mxu0 0.0
    %60 = vmatpush1.msra.mxu0 0.0
    %61 = vmatprep.subr.mxu0 0.0
    %62 = vmatpush1.msra.mxu0 0.0
    %63 = vmatprep.subr.mxu0 0.0
    %64 = vmatpush1.msra.mxu0 0.0
    %65 = vmatprep.subr.mxu0 0.0
    %66 = vmatpush1.msra.mxu0 0.0
    %67 = vmatprep.subr.mxu0 0.0
    %68 = vmatpush1.msra.mxu0 0.0
    %69 = vmatprep.subr.mxu0 0.0
    %70 = vmatpush1.msra.mxu0 0.0
    %71 = vmatprep.subr.mxu0 0.0
    %72 = vmatpush1.msra.mxu0 0.0
    %73 = vmatprep.subr.mxu0 0.0
    %74 = vmatpush1.msra.mxu0 0.0
    %75 = vmatprep.subr.mxu0 0.0
    %76 = vmatpush1.msra.mxu0 0.0
    %77 = vmatprep.subr.mxu0 0.0
    %78 = vmatpush1.msra.mxu0 0.0
    %79 = vmatprep.subr.mxu0 0.0
    %80 = vmatpush1.msra.mxu0 0.0
    %81 = vmatprep.subr.mxu0 0.0
    %82 = vmatpush1.msra.mxu0 0.0
    %83 = vmatprep.subr.mxu0 0.0
    %84 = vmatpush1.msra.mxu0 0.0
    %85 = vmatprep.subr.mxu0 0.0
    %86 = vmatpush1.msra.mxu0 0.0
    %87 = vmatprep.subr.mxu0 0.0
    %88 = vmatpush1.msra.mxu0 0.0
    %89 = vmatprep.subr.mxu0 0.0
    %90 = vmatpush1.msra.mxu0 0.0
    %91 = vmatprep.subr.mxu0 0.0
    %92 = vmatpush1.msra.mxu0 0.0
    %93 = vmatprep.subr.mxu0 0.0
    %94 = vmatpush1.msra.mxu0 0.0
    %95 = vmatprep.subr.mxu0 0.0
    %96 = vmatpush1.msra.mxu0 0.0
    %97 = vmatprep.subr.mxu0 0.0
    %98 = vmatpush1.msra.mxu0 0.0
    %99 = vmatprep.subr.mxu0 0.0
    %100 = vmatpush1.msra.mxu0 0.0
    %101 = vmatprep.subr.mxu0 0.0
    %102 = vmatpush1.msra.mxu0 0.0
    %103 = vmatprep.subr.mxu0 0.0
    %104 = vmatpush1.msra.mxu0 0.0
    %105 = vmatprep.subr.mxu0 0.0
    %106 = vmatpush1.msra.mxu0 0.0
    %107 = vmatprep.subr.mxu0 0.0
    %108 = vmatpush1.msra.mxu0 0.0
    %109 = vmatprep.subr.mxu0 0.0
    %110 = vmatpush1.msra.mxu0 0.0
    %111 = vmatprep.subr.mxu0 0.0
    %112 = vmatpush1.msra.mxu0 0.0
    %113 = vmatprep.mubr.f32.mxu0 0.0
    %114 = vmatmul.mubr.f32.gmra.mrb[0].mxu0 %v38
    %v115 = vpop.f32.mrb[0].mxu0
    %v116 = vadd.f32 %v34, %v115
    %v117 = vpop.f32.mrb[0].mxu0
    %118 = vmatprep.mubr.f32.mxu0 0.0
    %119 = vmatmul.mubr.f32.gmra.mrb[0].mxu0 %v41
    %v120 = vpop.f32.mrb[0].mxu0
    %v121 = vadd.f32 %v34, %v120
    %v122 = vpop.f32.mrb[0].mxu0
    %123 = vmatprep.mubr.f32.mxu0 0.0
    %124 = vmatmul.mubr.f32.gmra.mrb[0].mxu0 %v44
    %v125 = vpop.f32.mrb[0].mxu0
    %v126 = vadd.f32 %v34, %v125
    %v127 = vpop.f32.mrb[0].mxu0
    %128 = vmatprep.mubr.f32.mxu0 0.0
    %129 = vmatmul.mubr.f32.gmra.mrb[0].mxu0 %v47
    %v130 = vpop.f32.mrb[0].mxu0
    %v131 = vadd.f32 %v34, %v130
    %v132 = vpop.f32.mrb[0].mxu0
    %133 = vdwg.mxu0
    %v134 = vmul.f32 %v116, 0.5
    %v135 = vmul.f32 %v121, 0.5
    %v136 = vmul.f32 %v126, 0.5
    %v137 = vmul.f32 %v131, 0.5
    %v138 = vmul.f32 %v116, 0.70710677
    %v139 = vmul.f32 %v121, 0.70710677
    %v140 = vmul.f32 %v126, 0.70710677
    %v141 = vmul.f32 %v131, 0.70710677
    %v142 = verf.f32.pop %v138
    %v143 = verf.f32.pop %v139
    %v144 = verf.f32.pop %v140
    %v145 = verf.f32.pop %v141
    %v146 = vadd.f32 %v142, 1.0
    %v147 = vadd.f32 %v143, 1.0
    %v148 = vadd.f32 %v144, 1.0
    %v149 = vadd.f32 %v145, 1.0
    %v150 = vmul.f32 %v134, %v146
    %v151 = vmul.f32 %v135, %v147
    %v152 = vmul.f32 %v136, %v148
    %v153 = vmul.f32 %v137, %v149
    %v154 = vld [vmem:[%s3] sm:$0xff]
    %v155 = vld [vmem:[%s3 + $0x8] sm:$0xff]
    %v156 = vld [vmem:[%s3 + $0x10] sm:$0xff]
    %v157 = vld [vmem:[%s3 + $0x18] sm:$0xff]
    %v158 = vld [vmem:[%s3 + $0x20] sm:$0xff]
    %v159 = vld [vmem:[%s3 + $0x28] sm:$0xff]
    %v160 = vld [vmem:[%s3 + $0x30] sm:$0xff]
    %v161 = vld [vmem:[%s3 + $0x38] sm:$0xff]
    %v162 = vld [vmem:[%s3 + $0x40] sm:$0xff]
    %v163 = vld [vmem:[%s3 + $0x48] sm:$0xff]
    %v164 = vld [vmem:[%s3 + $0x50] sm:$0xff]
    %v165 = vld [vmem:[%s3 + $0x58] sm:$0xff]
    %v166 = vld [vmem:[%s3 + $0x60] sm:$0xff]
    %v167 = vld [vmem:[%s3 + $0x68] sm:$0xff]
    %v168 = vld [vmem:[%s3 + $0x70] sm:$0xff]
    %v169 = vld [vmem:[%s3 + $0x78] sm:$0xff]
    %v170 = vld [vmem:[%s4] sm:$0x1]
    %v172 = vlaneseq
    %v173 = vshrl.u32 %v172, 7
    %v174 = vsub.s32 0, %v173
    %v175 = vrot.slane %v170, %v174
    %177 = vmatprep.subr.mxu0 0.0
    %178 = vmatpush1.msra.mxu0 %v154
    %179 = vmatprep.subr.mxu0 0.0
    %180 = vmatpush1.msra.mxu0 %v155
    %181 = vmatprep.subr.mxu0 0.0
    %182 = vmatpush1.msra.mxu0 %v156
    %183 = vmatprep.subr.mxu0 0.0
    %184 = vmatpush1.msra.mxu0 %v157
    %185 = vmatprep.subr.mxu0 0.0
    %186 = vmatpush1.msra.mxu0 %v158
    %187 = vmatprep.subr.mxu0 0.0
    %188 = vmatpush1.msra.mxu0 %v159
    %189 = vmatprep.subr.mxu0 0.0
    %190 = vmatpush1.msra.mxu0 %v160
    %191 = vmatprep.subr.mxu0 0.0
    %192 = vmatpush1.msra.mxu0 %v161
    %193 = vmatprep.subr.mxu0 0.0
    %194 = vmatpush1.msra.mxu0 %v162
    %195 = vmatprep.subr.mxu0 0.0
    %196 = vmatpush1.msra.mxu0 %v163
    %197 = vmatprep.subr.mxu0 0.0
    %198 = vmatpush1.msra.mxu0 %v164
    %199 = vmatprep.subr.mxu0 0.0
    %200 = vmatpush1.msra.mxu0 %v165
    %201 = vmatprep.subr.mxu0 0.0
    %202 = vmatpush1.msra.mxu0 %v166
    %203 = vmatprep.subr.mxu0 0.0
    %204 = vmatpush1.msra.mxu0 %v167
    %205 = vmatprep.subr.mxu0 0.0
    %206 = vmatpush1.msra.mxu0 %v168
    %207 = vmatprep.subr.mxu0 0.0
    %208 = vmatpush1.msra.mxu0 %v169
    %209 = vmatprep.subr.mxu0 0.0
    %210 = vmatpush1.msra.mxu0 0.0
    %211 = vmatprep.subr.mxu0 0.0
    %212 = vmatpush1.msra.mxu0 0.0
    %213 = vmatprep.subr.mxu0 0.0
    %214 = vmatpush1.msra.mxu0 0.0
    %215 = vmatprep.subr.mxu0 0.0
    %216 = vmatpush1.msra.mxu0 0.0
    %217 = vmatprep.subr.mxu0 0.0
    %218 = vmatpush1.msra.mxu0 0.0
    %219 = vmatprep.subr.mxu0 0.0
    %220 = vmatpush1.msra.mxu0 0.0
    %221 = vmatprep.subr.mxu0 0.0
    %222 = vmatpush1.msra.mxu0 0.0
    %223 = vmatprep.subr.mxu0 0.0
    %224 = vmatpush1.msra.mxu0 0.0
    %225 = vmatprep.subr.mxu0 0.0
    %226 = vmatpush1.msra.mxu0 0.0
    %227 = vmatprep.subr.mxu0 0.0
    %228 = vmatpush1.msra.mxu0 0.0
    %229 = vmatprep.subr.mxu0 0.0
    %230 = vmatpush1.msra.mxu0 0.0
    %231 = vmatprep.subr.mxu0 0.0
    %232 = vmatpush1.msra.mxu0 0.0
    %233 = vmatprep.subr.mxu0 0.0
    %234 = vmatpush1.msra.mxu0 0.0
    %235 = vmatprep.subr.mxu0 0.0
    %236 = vmatpush1.msra.mxu0 0.0
    %237 = vmatprep.subr.mxu0 0.0
    %238 = vmatpush1.msra.mxu0 0.0
    %239 = vmatprep.subr.mxu0 0.0
    %240 = vmatpush1.msra.mxu0 0.0
    %241 = vmatprep.mubr.f32.mxu0 0.0
    %242 = vmatmul.mubr.f32.gmra.mrb[0].mxu0 %v150
    %v243 = vpop.f32.mrb[0].mxu0
    %v244 = vadd.f32 %v175, %v243
    %v245 = vpop.f32.mrb[0].mxu0
    %246 = vmatprep.mubr.f32.mxu0 0.0
    %247 = vmatmul.mubr.f32.gmra.mrb[0].mxu0 %v151
    %v248 = vpop.f32.mrb[0].mxu0
    %v249 = vadd.f32 %v175, %v248
    %v250 = vpop.f32.mrb[0].mxu0
    %251 = vmatprep.mubr.f32.mxu0 0.0
    %252 = vmatmul.mubr.f32.gmra.mrb[0].mxu0 %v152
    %v253 = vpop.f32.mrb[0].mxu0
    %v254 = vadd.f32 %v175, %v253
    %v255 = vpop.f32.mrb[0].mxu0
    %256 = vmatprep.mubr.f32.mxu0 0.0
    %257 = vmatmul.mubr.f32.gmra.mrb[0].mxu0 %v153
    %v258 = vpop.f32.mrb[0].mxu0
    %v259 = vadd.f32 %v175, %v258
    %v260 = vpop.f32.mrb[0].mxu0
    %261 = vdwg.mxu0
    %262 = vst.msk [vmem:[#allocation2] sm:$0xff] %vm36, %v244
    %263 = vst.msk [vmem:[#allocation2 + $0x8] sm:$0xff] %vm36, %v249
    %264 = vst.msk [vmem:[#allocation2 + $0x10] sm:$0xff] %vm36, %v254
    %265 = vst.msk [vmem:[#allocation2 + $0x18] sm:$0xff] %vm36, %v259
    // Predicated region
    $region22: #{tpu_custom_call.1} parent=1 // pred_check
      _
    $region23: #{tpu_custom_call.1} parent=1 // pred_check_branch
      %267 = sbr.rel (0) target = $region25
    $region24: #{tpu_custom_call.1} parent=1 // pred_region
      %s269 = ssub.s32 512, 512
      %270 = vsyncadd [#allocation3], %s269
      %s271 = sshll.u32 [#allocation2], 4
      %s272 = int_to_ptr.vmem [resolvable:$true] %s271
      %277 = dma.vmem_to_hbm [thread:$0]  %s272, 512, %s5, [#allocation3], 128, 128, 8
    $region25: #{tpu_custom_call.1} parent=1 // pred_fallthru
      _
    // Predicated region
    $region26: #{tpu_custom_call.1} parent=1 // pred_check
      _
    $region27: #{tpu_custom_call.1} parent=1 // pred_check_branch
      %279 = sbr.rel (0) target = $region29
    $region28: #{tpu_custom_call.1} parent=1 // pred_region
      %280 = dma.done [#allocation3], 512
    $region29: #{tpu_custom_call.1} parent=1 // pred_fallthru
      _
    %281 = vsyncpa [#allocation3], 1

</llo_original>
